<compile_context>
chip_gen: v6e
topology: v6e:2x2x1
jax: 0.10.0
libtpu: 0.0.40
codegen_flags: <defaults>
</compile_context>

<pallas_src>
import functools

import jax
import jax.numpy as jnp
from jax.experimental import pallas as pl
from jax.experimental.pallas import tpu as pltpu


def _disc_kernel(x_ref, w1_ref, b1_ref, w2_ref, b2_ref, w3_ref, b3_ref, o_ref):
    # x_ref: (TM, D)   w*: (in, out)   b*: (1, out)   o_ref: (TM, 2)
    x = x_ref[...].astype(jnp.float32)  # cast in-kernel: accept bf16/f16 HBM reads
    h = jnp.dot(x, w1_ref[...], preferred_element_type=jnp.float32)
    h = jnp.maximum(h + b1_ref[...], 0.0)
    h = jnp.dot(h, w2_ref[...], preferred_element_type=jnp.float32)
    h = jnp.maximum(h + b2_ref[...], 0.0)
    h = jnp.dot(h, w3_ref[...], preferred_element_type=jnp.float32)
    h = jnp.maximum(h + b3_ref[...], 0.0)
    o_ref[...] = h.astype(o_ref.dtype)


def _default_tile_m():
    """Row-tile size tuned per chip generation (HBM-bound kernel:
    per-step payload should be comparable to the ~0.35us fixed step cost)."""
    try:
        kind = jax.devices()[0].device_kind.lower()
    except Exception:
        return 1024
    if "v5" in kind:
        return 2048          # ~256 KiB f32 input block
    if "v6" in kind:
        return 4096          # ~512 KiB
    if "7" in kind:
        return 8192          # ~1 MiB; well under v7x's 64 MiB VMEM
    return 2048


_TILE_M = _default_tile_m()


def _fused_mlp(xf, w1, b1, w2, b2, w3, b3, *, tile_m):
    n, d = xf.shape
    h1 = w1.shape[1]
    h2 = w2.shape[1]
    h3 = w3.shape[1]

    # Normalize the row tile: multiple of 8 (sublane rule), clamped to n.
    tm = max(8, (int(tile_m) // 8) * 8)
    if n <= tm:
        tm = n  # block second-minor == full dim is always legal

    grid = (pl.cdiv(n, tm),)  # partial last block handled by Pallas (reads
    #                           beyond n are scratch rows, writes are masked)
    full = lambda i: (0, 0)   # weights/biases: same (whole) block every step

    return pl.pallas_call(
        _disc_kernel,
        out_shape=jax.ShapeDtypeStruct((n, h3), jnp.float32),
        grid_spec=pltpu.PrefetchScalarGridSpec(
            num_scalar_prefetch=0,
            grid=grid,
            in_specs=[
                pl.BlockSpec((tm, d), lambda i: (i, 0)),   # x rows (pipelined)
                pl.BlockSpec((d, h1), full),               # W1 (VMEM resident)
                pl.BlockSpec((1, h1), full),               # b1
                pl.BlockSpec((h1, h2), full),              # W2
                pl.BlockSpec((1, h2), full),               # b2
                pl.BlockSpec((h2, h3), full),              # W3
                pl.BlockSpec((1, h3), full),               # b3
            ],
            out_specs=pl.BlockSpec((tm, h3), lambda i: (i, 0)),
        ),
        compiler_params=pltpu.CompilerParams(
            dimension_semantics=("parallel",),
            vmem_limit_bytes=48 * 1024 * 1024,
        ),
    )(xf, w1, b1, w2, b2, w3, b3)


def init_discriminator_params(outputs_size, K=2, seed=0):
    """Deterministic PyTorch-Linear-style init: U(-1/sqrt(fan_in), 1/sqrt(fan_in)).

    Weights are stored transposed as (in, out) so the kernel can do x @ W."""
    key = jax.random.PRNGKey(seed)
    dims = []
    d = outputs_size
    dims.append((d, d // K)); d = d // K
    dims.append((d, d // K)); d = d // K
    dims.append((d, 2))

    params = []
    for (fan_in, fan_out) in dims:
        key, kw, kb = jax.random.split(key, 3)
        bound = 1.0 / (fan_in ** 0.5)
        w = jax.random.uniform(kw, (fan_in, fan_out), jnp.float32, -bound, bound)
        b = jax.random.uniform(kb, (1, fan_out), jnp.float32, -bound, bound)
        params.append((w, b))
    return params


@functools.partial(jax.jit, static_argnames=("tile_m",))
def discriminator_forward(x, w1, b1, w2, b2, w3, b3, tile_m=None):
    B, M, D = x.shape
    if tile_m is None:
        tile_m = _TILE_M
    # x[:, :, None, None] -> (B, M, 1, 1, D); the two singleton dims are
    # trivial, so the kernel works on the flattened (B*M, D) matrix.
    xf = x.reshape(B * M, D)          # no dtype cast here: the kernel casts
    out = _fused_mlp(xf, w1, b1, w2, b2, w3, b3, tile_m=tile_m)
    # (B*M, 2) is row-major identical to (B, M, 1, 1, 2); out.view(B, -1).
    return out.reshape(B, M * 2)


def _reference_forward(x, w1, b1, w2, b2, w3, b3):
    # Pure-JAX reference mirroring the PyTorch module exactly.
    x5 = x[:, :, None, None, :].astype(jnp.float32)
    h = jax.nn.relu(jnp.einsum("...d,dh->...h", x5, w1) + b1[0])
    h = jax.nn.relu(jnp.einsum("...d,dh->...h", h, w2) + b2[0])
    h = jax.nn.relu(jnp.einsum("...d,dh->...h", h, w3) + b3[0])
    return h.reshape(h.shape[0], -1)


if __name__ == "__main__":
    B, M, D, K = 2, 8, 32, 2  # outputs_size = D = 32

    key = jax.random.PRNGKey(0)
    x = jax.random.normal(key, (B, M, D), dtype=jnp.float32)

    (w1, b1), (w2, b2), (w3, b3) = init_discriminator_params(D, K=K, seed=0)

    # 1) f32 input, default (chip-tuned) tile.
    out = discriminator_forward(x, w1, b1, w2, b2, w3, b3)
    out = jax.block_until_ready(out)
    ref = _reference_forward(x, w1, b1, w2, b2, w3, b3)
    assert out.shape == (B, M * 2), out.shape
    assert jnp.allclose(out, ref, atol=1e-5, rtol=1e-5), "f32 mismatch vs reference"

    # 2) bf16 input: kernel casts in-kernel; reference sees the same rounded input.
    x_bf = x.astype(jnp.bfloat16)
    out_bf = jax.block_until_ready(
        discriminator_forward(x_bf, w1, b1, w2, b2, w3, b3))
    ref_bf = _reference_forward(x_bf.astype(jnp.float32), w1, b1, w2, b2, w3, b3)
    assert jnp.allclose(out_bf, ref_bf, atol=1e-4, rtol=1e-4), "bf16 mismatch"

    # 3) Row count not divisible by the tile: exercises cdiv grid + partial block.
    key2 = jax.random.PRNGKey(1)
    x2 = jax.random.normal(key2, (3, 50, D), dtype=jnp.float32)   # 150 rows
    out2 = jax.block_until_ready(
        discriminator_forward(x2, w1, b1, w2, b2, w3, b3, tile_m=64))
    ref2 = _reference_forward(x2, w1, b1, w2, b2, w3, b3)
    assert out2.shape == (3, 50 * 2), out2.shape
    assert jnp.allclose(out2, ref2, atol=1e-5, rtol=1e-5), "partial-tile mismatch"

    print("KERNEL_OK")
</pallas_src>

<mosaic_0001>
module attributes {stable_mosaic.version = 11 : i64} {
  func.func @_disc_kernel(%arg0: i32, %arg1: memref<16x32xf32, #tpu.memory_space<vmem>>, %arg2: memref<32x16xf32, #tpu.memory_space<vmem>>, %arg3: memref<1x16xf32, #tpu.memory_space<vmem>>, %arg4: memref<16x8xf32, #tpu.memory_space<vmem>>, %arg5: memref<1x8xf32, #tpu.memory_space<vmem>>, %arg6: memref<8x2xf32, #tpu.memory_space<vmem>>, %arg7: memref<1x2xf32, #tpu.memory_space<vmem>>, %arg8: memref<16x2xf32, #tpu.memory_space<vmem>>) attributes {dimension_semantics = [#tpu.dimension_semantics<parallel>], iteration_bounds = array<i64: 1>, scalar_prefetch = 0 : i64, scratch_operands = 0 : i64, tpu.core_type = #tpu.core_type<tc>, window_params = [{transform_indices = @transform_0, window_bounds = array<i64: 16, 32>}, {pipeline_mode = #tpu.pipeline_mode<synchronous>, transform_indices = @transform_1, window_bounds = array<i64: 32, 16>}, {pipeline_mode = #tpu.pipeline_mode<synchronous>, transform_indices = @transform_2, window_bounds = array<i64: 1, 16>}, {pipeline_mode = #tpu.pipeline_mode<synchronous>, transform_indices = @transform_3, window_bounds = array<i64: 16, 8>}, {pipeline_mode = #tpu.pipeline_mode<synchronous>, transform_indices = @transform_4, window_bounds = array<i64: 1, 8>}, {pipeline_mode = #tpu.pipeline_mode<synchronous>, transform_indices = @transform_5, window_bounds = array<i64: 8, 2>}, {pipeline_mode = #tpu.pipeline_mode<synchronous>, transform_indices = @transform_6, window_bounds = array<i64: 1, 2>}, {transform_indices = @transform_7, window_bounds = array<i64: 16, 2>}]} {
    %c0 = arith.constant 0 : index
    %c0_0 = arith.constant 0 : index
    %0 = vector.load %arg1[%c0, %c0_0] : memref<16x32xf32, #tpu.memory_space<vmem>>, vector<16x32xf32>
    %c0_1 = arith.constant 0 : index
    %c0_2 = arith.constant 0 : index
    %1 = vector.load %arg2[%c0_1, %c0_2] : memref<32x16xf32, #tpu.memory_space<vmem>>, vector<32x16xf32>
    %cst = arith.constant dense<0.000000e+00> : vector<16x16xf32>
    %2 = tpu.matmul %0, %1, %cst {dimension_numbers = #tpu.dot_dimension_numbers<[1], [0], [0], [1], [0, 0, 1, 1], [], []>} : vector<16x32xf32>, vector<32x16xf32>, vector<16x16xf32> -> vector<16x16xf32>
    %c0_3 = arith.constant 0 : index
    %c0_4 = arith.constant 0 : index
    %3 = vector.load %arg3[%c0_3, %c0_4] : memref<1x16xf32, #tpu.memory_space<vmem>>, vector<1x16xf32>
    %4 = vector.broadcast %3 : vector<1x16xf32> to vector<16x16xf32>
    %5 = arith.addf %2, %4 : vector<16x16xf32>
    %cst_5 = arith.constant 0.000000e+00 : f32
    %6 = vector.broadcast %cst_5 : f32 to vector<16x16xf32>
    %7 = arith.maximumf %5, %6 : vector<16x16xf32>
    %c0_6 = arith.constant 0 : index
    %c0_7 = arith.constant 0 : index
    %8 = vector.load %arg4[%c0_6, %c0_7] : memref<16x8xf32, #tpu.memory_space<vmem>>, vector<16x8xf32>
    %cst_8 = arith.constant dense<0.000000e+00> : vector<16x8xf32>
    %9 = tpu.matmul %7, %8, %cst_8 {dimension_numbers = #tpu.dot_dimension_numbers<[1], [0], [0], [1], [0, 0, 1, 1], [], []>} : vector<16x16xf32>, vector<16x8xf32>, vector<16x8xf32> -> vector<16x8xf32>
    %c0_9 = arith.constant 0 : index
    %c0_10 = arith.constant 0 : index
    %10 = vector.load %arg5[%c0_9, %c0_10] : memref<1x8xf32, #tpu.memory_space<vmem>>, vector<1x8xf32>
    %11 = vector.broadcast %10 : vector<1x8xf32> to vector<16x8xf32>
    %12 = arith.addf %9, %11 : vector<16x8xf32>
    %cst_11 = arith.constant 0.000000e+00 : f32
    %13 = vector.broadcast %cst_11 : f32 to vector<16x8xf32>
    %14 = arith.maximumf %12, %13 : vector<16x8xf32>
    %c0_12 = arith.constant 0 : index
    %c0_13 = arith.constant 0 : index
    %15 = vector.load %arg6[%c0_12, %c0_13] : memref<8x2xf32, #tpu.memory_space<vmem>>, vector<8x2xf32>
    %cst_14 = arith.constant dense<0.000000e+00> : vector<16x2xf32>
    %16 = tpu.matmul %14, %15, %cst_14 {dimension_numbers = #tpu.dot_dimension_numbers<[1], [0], [0], [1], [0, 0, 1, 1], [], []>} : vector<16x8xf32>, vector<8x2xf32>, vector<16x2xf32> -> vector<16x2xf32>
    %c0_15 = arith.constant 0 : index
    %c0_16 = arith.constant 0 : index
    %17 = vector.load %arg7[%c0_15, %c0_16] : memref<1x2xf32, #tpu.memory_space<vmem>>, vector<1x2xf32>
    %18 = vector.broadcast %17 : vector<1x2xf32> to vector<16x2xf32>
    %19 = arith.addf %16, %18 : vector<16x2xf32>
    %cst_17 = arith.constant 0.000000e+00 : f32
    %20 = vector.broadcast %cst_17 : f32 to vector<16x2xf32>
    %21 = arith.maximumf %19, %20 : vector<16x2xf32>
    %c0_18 = arith.constant 0 : index
    %c0_19 = arith.constant 0 : index
    %22 = vector.load %arg8[%c0_18, %c0_19] : memref<16x2xf32, #tpu.memory_space<vmem>>, vector<16x2xf32>
    tpu.vector_store %arg8[%c0_18, %c0_19], %21 {strides = array<i32>} : memref<16x2xf32, #tpu.memory_space<vmem>>, vector<16x2xf32>,
    return
  }
  func.func @transform_0(%arg0: i32) -> (i32, i32) {
    %c0_i32 = arith.constant 0 : i32
    %c0_i32_0 = arith.constant 0 : i32
    return %arg0, %c0_i32 : i32, i32
  }
  func.func @transform_1(%arg0: i32) -> (i32, i32) {
    %c0_i32 = arith.constant 0 : i32
    %c0_i32_0 = arith.constant 0 : i32
    %c0_i32_1 = arith.constant 0 : i32
    return %c0_i32, %c0_i32_0 : i32, i32
  }
  func.func @transform_2(%arg0: i32) -> (i32, i32) {
    %c0_i32 = arith.constant 0 : i32
    %c0_i32_0 = arith.constant 0 : i32
    %c0_i32_1 = arith.constant 0 : i32
    return %c0_i32, %c0_i32_0 : i32, i32
  }
  func.func @transform_3(%arg0: i32) -> (i32, i32) {
    %c0_i32 = arith.constant 0 : i32
    %c0_i32_0 = arith.constant 0 : i32
    %c0_i32_1 = arith.constant 0 : i32
    return %c0_i32, %c0_i32_0 : i32, i32
  }
  func.func @transform_4(%arg0: i32) -> (i32, i32) {
    %c0_i32 = arith.constant 0 : i32
    %c0_i32_0 = arith.constant 0 : i32
    %c0_i32_1 = arith.constant 0 : i32
    return %c0_i32, %c0_i32_0 : i32, i32
  }
  func.func @transform_5(%arg0: i32) -> (i32, i32) {
    %c0_i32 = arith.constant 0 : i32
    %c0_i32_0 = arith.constant 0 : i32
    %c0_i32_1 = arith.constant 0 : i32
    return %c0_i32, %c0_i32_0 : i32, i32
  }
  func.func @transform_6(%arg0: i32) -> (i32, i32) {
    %c0_i32 = arith.constant 0 : i32
    %c0_i32_0 = arith.constant 0 : i32
    %c0_i32_1 = arith.constant 0 : i32
    return %c0_i32, %c0_i32_0 : i32, i32
  }
  func.func @transform_7(%arg0: i32) -> (i32, i32) {
    %c0_i32 = arith.constant 0 : i32
    %c0_i32_0 = arith.constant 0 : i32
    return %arg0, %c0_i32 : i32, i32
  }
}

</mosaic_0001>

<llo_original>
// kernel: discriminator_forward.1
$region0: #{discriminator_forward.1}
  #allocation0 [shape = 'u32[]', space=smem, size = 0x4, offset = 0x4, fixed_abs, tag = 'smem constant byte address 0x4 - core index']
  #allocation1 [shape = 'u32[144,128]{1,0:T(1,128)}', space=vmem, size = 0x12000, scoped, tag = 'internal scratch']
  %s0 = inlined_call_operand.vmem [shape: f32[16,32], index: 0, kind: input, shape index: {}]
  %s1 = inlined_call_operand.vmem [shape: f32[32,16], index: 1, kind: input, shape index: {}]
  %s2 = inlined_call_operand.vmem [shape: f32[1,16], index: 2, kind: input, shape index: {}]
  %s3 = inlined_call_operand.vmem [shape: f32[16,8], index: 3, kind: input, shape index: {}]
  %s4 = inlined_call_operand.vmem [shape: f32[1,8], index: 4, kind: input, shape index: {}]
  %s5 = inlined_call_operand.vmem [shape: f32[8,2], index: 5, kind: input, shape index: {}]
  %s6 = inlined_call_operand.vmem [shape: f32[1,2], index: 6, kind: input, shape index: {}]
  %s7 = inlined_call_operand.vmem [shape: f32[16,2], index: 7, kind: output, shape index: {}]
  %s8 = sld [smem:[#allocation0]]
  $region38: #{discriminator_forward.1} parent=0
    _
  %s10 = ssub.s32 1, %s8
  %s11 = scalar_select 0, %s10, %s8
  // Predicated region
  $region2: #{discriminator_forward.1} parent=0 // pred_check
    _
  $region3: #{discriminator_forward.1} parent=0 // pred_check_branch
    %13 = sbr.rel (0) target = $region5
  $region4: #{discriminator_forward.1} parent=0 // pred_region
    _
  $region5: #{discriminator_forward.1} parent=0 // pred_fallthru
    _
  // Predicated region
  $region6: #{discriminator_forward.1} parent=0 // pred_check
    _
  $region7: #{discriminator_forward.1} parent=0 // pred_check_branch
    %15 = sbr.rel (0) target = $region9
  $region8: #{discriminator_forward.1} parent=0 // pred_region
    _
  $region9: #{discriminator_forward.1} parent=0 // pred_fallthru
    _
  // Predicated region
  $region10: #{discriminator_forward.1} parent=0 // pred_check
    _
  $region11: #{discriminator_forward.1} parent=0 // pred_check_branch
    %17 = sbr.rel (0) target = $region13
  $region12: #{discriminator_forward.1} parent=0 // pred_region
    _
  $region13: #{discriminator_forward.1} parent=0 // pred_fallthru
    _
  // Predicated region
  $region14: #{discriminator_forward.1} parent=0 // pred_check
    _
  $region15: #{discriminator_forward.1} parent=0 // pred_check_branch
    %19 = sbr.rel (0) target = $region17
  $region16: #{discriminator_forward.1} parent=0 // pred_region
    _
  $region17: #{discriminator_forward.1} parent=0 // pred_fallthru
    _
  // Predicated region
  $region18: #{discriminator_forward.1} parent=0 // pred_check
    _
  $region19: #{discriminator_forward.1} parent=0 // pred_check_branch
    %21 = sbr.rel (0) target = $region21
  $region20: #{discriminator_forward.1} parent=0 // pred_region
    _
  $region21: #{discriminator_forward.1} parent=0 // pred_fallthru
    _
  // Predicated region
  $region22: #{discriminator_forward.1} parent=0 // pred_check
    _
  $region23: #{discriminator_forward.1} parent=0 // pred_check_branch
    %23 = sbr.rel (0) target = $region25
  $region24: #{discriminator_forward.1} parent=0 // pred_region
    _
  $region25: #{discriminator_forward.1} parent=0 // pred_fallthru
    _
  // Predicated region
  $region26: #{discriminator_forward.1} parent=0 // pred_check
    _
  $region27: #{discriminator_forward.1} parent=0 // pred_check_branch
    %25 = sbr.rel (0) target = $region29
  $region28: #{discriminator_forward.1} parent=0 // pred_region
    _
  $region29: #{discriminator_forward.1} parent=0 // pred_fallthru
    _
  %v26 = vld [vmem:[%s0] sm:$0xff]
  %v27 = vld [vmem:[%s0 + $0x8] sm:$0xff]
  %v28 = vld [vmem:[%s1] sm:$0xff]
  %v29 = vld [vmem:[%s1 + $0x8] sm:$0xff]
  %v30 = vld [vmem:[%s1 + $0x10] sm:$0xff]
  %v31 = vld [vmem:[%s1 + $0x18] sm:$0xff]
  %v32 = vld [vmem:[%s2] sm:$0x1]
  %v34 = vlaneseq
  %v35 = vshrl.u32 %v34, 7
  %v36 = vsub.s32 0, %v35
  %v37 = vrot.slane %v32, %v36
  %vm39 = vcmask 261120
  %v41 = vsel %vm39, %v26, 0
  %v44 = vsel %vm39, %v27, 0
  %46 = vmatprep.subr.mxu0 0.0
  %47 = vmatpush1.msra.mxu0 0.0
  %48 = vmatprep.subr.mxu0 0.0
  %49 = vmatpush1.msra.mxu0 0.0
  %50 = vmatprep.subr.mxu0 0.0
  %51 = vmatpush1.msra.mxu0 0.0
  %52 = vmatprep.subr.mxu0 0.0
  %53 = vmatpush1.msra.mxu0 0.0
  %54 = vmatprep.subr.mxu0 0.0
  %55 = vmatpush1.msra.mxu0 0.0
  %56 = vmatprep.subr.mxu0 0.0
  %57 = vmatpush1.msra.mxu0 0.0
  %58 = vmatprep.subr.mxu0 0.0
  %59 = vmatpush1.msra.mxu0 0.0
  %60 = vmatprep.subr.mxu0 0.0
  %61 = vmatpush1.msra.mxu0 0.0
  %62 = vmatprep.subr.mxu0 0.0
  %63 = vmatpush1.msra.mxu0 0.0
  %64 = vmatprep.subr.mxu0 0.0
  %65 = vmatpush1.msra.mxu0 0.0
  %66 = vmatprep.subr.mxu0 0.0
  %67 = vmatpush1.msra.mxu0 0.0
  %68 = vmatprep.subr.mxu0 0.0
  %69 = vmatpush1.msra.mxu0 0.0
  %70 = vmatprep.subr.mxu0 0.0
  %71 = vmatpush1.msra.mxu0 %v31
  %72 = vmatprep.subr.mxu0 0.0
  %73 = vmatpush1.msra.mxu0 %v30
  %74 = vmatprep.subr.mxu0 0.0
  %75 = vmatpush1.msra.mxu0 %v29
  %76 = vmatprep.subr.mxu0 0.0
  %77 = vmatpush1.msra.mxu0 %v28
  %78 = vmatprep.subr.mxu0 0.0
  %79 = vmatpush2.msra.mxu0 0.0
  %80 = vmatprep.subr.mxu0 0.0
  %81 = vmatpush2.msra.mxu0 0.0
  %82 = vmatprep.subr.mxu0 0.0
  %83 = vmatpush2.msra.mxu0 0.0
  %84 = vmatprep.subr.mxu0 0.0
  %85 = vmatpush2.msra.mxu0 0.0
  %86 = vmatprep.subr.mxu0 0.0
  %87 = vmatpush2.msra.mxu0 0.0
  %88 = vmatprep.subr.mxu0 0.0
  %89 = vmatpush2.msra.mxu0 0.0
  %90 = vmatprep.subr.mxu0 0.0
  %91 = vmatpush2.msra.mxu0 0.0
  %92 = vmatprep.subr.mxu0 0.0
  %93 = vmatpush2.msra.mxu0 0.0
  %94 = vmatprep.subr.mxu0 0.0
  %95 = vmatpush2.msra.mxu0 0.0
  %96 = vmatprep.subr.mxu0 0.0
  %97 = vmatpush2.msra.mxu0 0.0
  %98 = vmatprep.subr.mxu0 0.0
  %99 = vmatpush2.msra.mxu0 0.0
  %100 = vmatprep.subr.mxu0 0.0
  %101 = vmatpush2.msra.mxu0 0.0
  %102 = vmatprep.subr.mxu0 0.0
  %103 = vmatpush2.msra.mxu0 0.0
  %104 = vmatprep.subr.mxu0 0.0
  %105 = vmatpush2.msra.mxu0 0.0
  %106 = vmatprep.subr.mxu0 0.0
  %107 = vmatpush2.msra.mxu0 0.0
  %108 = vmatprep.subr.mxu0 0.0
  %109 = vmatpush2.msra.mxu0 0.0
  %110 = vmatprep.mubr.f32.mxu0 0.0
  %111 = vmatmul.mubr.f32.gmra.mxu0 %v41
  %v112 = vpop.f32.mrf.mxu0
  %v113 = vadd.f32 %v37, %v112
  %v114 = vpop.f32.mrf.mxu0
  %115 = vmatprep.mubr.f32.mxu0 0.0
  %116 = vmatmul.mubr.f32.gmra.mxu0 %v44
  %v117 = vpop.f32.mrf.mxu0
  %v118 = vadd.f32 %v37, %v117
  %v119 = vpop.f32.mrf.mxu0
  %120 = vdwg.mxu0
  %v121 = vmax.f32 %v113, 0.0
  %v122 = vmax.f32 %v118, 0.0
  %v123 = vld [vmem:[%s3] sm:$0xff]
  %v124 = vld [vmem:[%s3 + $0x8] sm:$0xff]
  %v125 = vld [vmem:[%s4] sm:$0x1]
  %v127 = vlaneseq
  %v128 = vshrl.u32 %v127, 7
  %v129 = vsub.s32 0, %v128
  %v130 = vrot.slane %v125, %v129
  %vm132 = vcmask 130048
  %v134 = vsel %vm132, %v121, 0
  %v137 = vsel %vm132, %v122, 0
  %139 = vmatprep.subr.mxu0 0.0
  %140 = vmatpush1.msra.mxu0 0.0
  %141 = vmatprep.subr.mxu0 0.0
  %142 = vmatpush1.msra.mxu0 0.0
  %143 = vmatprep.subr.mxu0 0.0
  %144 = vmatpush1.msra.mxu0 0.0
  %145 = vmatprep.subr.mxu0 0.0
  %146 = vmatpush1.msra.mxu0 0.0
  %147 = vmatprep.subr.mxu0 0.0
  %148 = vmatpush1.msra.mxu0 0.0
  %149 = vmatprep.subr.mxu0 0.0
  %150 = vmatpush1.msra.mxu0 0.0
  %151 = vmatprep.subr.mxu0 0.0
  %152 = vmatpush1.msra.mxu0 0.0
  %153 = vmatprep.subr.mxu0 0.0
  %154 = vmatpush1.msra.mxu0 0.0
  %155 = vmatprep.subr.mxu0 0.0
  %156 = vmatpush1.msra.mxu0 0.0
  %157 = vmatprep.subr.mxu0 0.0
  %158 = vmatpush1.msra.mxu0 0.0
  %159 = vmatprep.subr.mxu0 0.0
  %160 = vmatpush1.msra.mxu0 0.0
  %161 = vmatprep.subr.mxu0 0.0
  %162 = vmatpush1.msra.mxu0 0.0
  %163 = vmatprep.subr.mxu0 0.0
  %164 = vmatpush1.msra.mxu0 0.0
  %165 = vmatprep.subr.mxu0 0.0
  %166 = vmatpush1.msra.mxu0 0.0
  %167 = vmatprep.subr.mxu0 0.0
  %168 = vmatpush1.msra.mxu0 %v124
  %169 = vmatprep.subr.mxu0 0.0
  %170 = vmatpush1.msra.mxu0 %v123
  %171 = vmatprep.subr.mxu0 0.0
  %172 = vmatpush2.msra.mxu0 0.0
  %173 = vmatprep.subr.mxu0 0.0
  %174 = vmatpush2.msra.mxu0 0.0
  %175 = vmatprep.subr.mxu0 0.0
  %176 = vmatpush2.msra.mxu0 0.0
  %177 = vmatprep.subr.mxu0 0.0
  %178 = vmatpush2.msra.mxu0 0.0
  %179 = vmatprep.subr.mxu0 0.0
  %180 = vmatpush2.msra.mxu0 0.0
  %181 = vmatprep.subr.mxu0 0.0
  %182 = vmatpush2.msra.mxu0 0.0
  %183 = vmatprep.subr.mxu0 0.0
  %184 = vmatpush2.msra.mxu0 0.0
  %185 = vmatprep.subr.mxu0 0.0
  %186 = vmatpush2.msra.mxu0 0.0
  %187 = vmatprep.subr.mxu0 0.0
  %188 = vmatpush2.msra.mxu0 0.0
  %189 = vmatprep.subr.mxu0 0.0
  %190 = vmatpush2.msra.mxu0 0.0
  %191 = vmatprep.subr.mxu0 0.0
  %192 = vmatpush2.msra.mxu0 0.0
  %193 = vmatprep.subr.mxu0 0.0
  %194 = vmatpush2.msra.mxu0 0.0
  %195 = vmatprep.subr.mxu0 0.0
  %196 = vmatpush2.msra.mxu0 0.0
  %197 = vmatprep.subr.mxu0 0.0
  %198 = vmatpush2.msra.mxu0 0.0
  %199 = vmatprep.subr.mxu0 0.0
  %200 = vmatpush2.msra.mxu0 0.0
  %201 = vmatprep.subr.mxu0 0.0
  %202 = vmatpush2.msra.mxu0 0.0
  %203 = vmatprep.mubr.f32.mxu0 0.0
  %204 = vmatmul.mubr.f32.gmra.mxu0 %v134
  %v205 = vpop.f32.mrf.mxu0
  %v206 = vadd.f32 %v130, %v205
  %v207 = vpop.f32.mrf.mxu0
  %208 = vmatprep.mubr.f32.mxu0 0.0
  %209 = vmatmul.mubr.f32.gmra.mxu0 %v137
  %v210 = vpop.f32.mrf.mxu0
  %v211 = vadd.f32 %v130, %v210
  %v212 = vpop.f32.mrf.mxu0
  %213 = vdwg.mxu0
  %v214 = vmax.f32 %v206, 0.0
  %v215 = vmax.f32 %v211, 0.0
  %v216 = vld [vmem:[%s5] sm:$0xff]
  %v217 = vld [vmem:[%s6] sm:$0x1]
  %v219 = vlaneseq
  %v220 = vshrl.u32 %v219, 7
  %v221 = vsub.s32 0, %v220
  %v222 = vrot.slane %v217, %v221
  %vm224 = vcmask 64512
  %v226 = vsel %vm224, %v214, 0
  %v229 = vsel %vm224, %v215, 0
  %231 = vmatprep.subr.mxu0 0.0
  %232 = vmatpush1.msra.mxu0 0.0
  %233 = vmatprep.subr.mxu0 0.0
  %234 = vmatpush1.msra.mxu0 0.0
  %235 = vmatprep.subr.mxu0 0.0
  %236 = vmatpush1.msra.mxu0 0.0
  %237 = vmatprep.subr.mxu0 0.0
  %238 = vmatpush1.msra.mxu0 0.0
  %239 = vmatprep.subr.mxu0 0.0
  %240 = vmatpush1.msra.mxu0 0.0
  %241 = vmatprep.subr.mxu0 0.0
  %242 = vmatpush1.msra.mxu0 0.0
  %243 = vmatprep.subr.mxu0 0.0
  %244 = vmatpush1.msra.mxu0 0.0
  %245 = vmatprep.subr.mxu0 0.0
  %246 = vmatpush1.msra.mxu0 0.0
  %247 = vmatprep.subr.mxu0 0.0
  %248 = vmatpush1.msra.mxu0 0.0
  %249 = vmatprep.subr.mxu0 0.0
  %250 = vmatpush1.msra.mxu0 0.0
  %251 = vmatprep.subr.mxu0 0.0
  %252 = vmatpush1.msra.mxu0 0.0
  %253 = vmatprep.subr.mxu0 0.0
  %254 = vmatpush1.msra.mxu0 0.0
  %255 = vmatprep.subr.mxu0 0.0
  %256 = vmatpush1.msra.mxu0 0.0
  %257 = vmatprep.subr.mxu0 0.0
  %258 = vmatpush1.msra.mxu0 0.0
  %259 = vmatprep.subr.mxu0 0.0
  %260 = vmatpush1.msra.mxu0 0.0
  %261 = vmatprep.subr.mxu0 0.0
  %262 = vmatpush1.msra.mxu0 %v216
  %263 = vmatprep.subr.mxu0 0.0
  %264 = vmatpush2.msra.mxu0 0.0
  %265 = vmatprep.subr.mxu0 0.0
  %266 = vmatpush2.msra.mxu0 0.0
  %267 = vmatprep.subr.mxu0 0.0
  %268 = vmatpush2.msra.mxu0 0.0
  %269 = vmatprep.subr.mxu0 0.0
  %270 = vmatpush2.msra.mxu0 0.0
  %271 = vmatprep.subr.mxu0 0.0
  %272 = vmatpush2.msra.mxu0 0.0
  %273 = vmatprep.subr.mxu0 0.0
  %274 = vmatpush2.msra.mxu0 0.0
  %275 = vmatprep.subr.mxu0 0.0
  %276 = vmatpush2.msra.mxu0 0.0
  %277 = vmatprep.subr.mxu0 0.0
  %278 = vmatpush2.msra.mxu0 0.0
  %279 = vmatprep.subr.mxu0 0.0
  %280 = vmatpush2.msra.mxu0 0.0
  %281 = vmatprep.subr.mxu0 0.0
  %282 = vmatpush2.msra.mxu0 0.0
  %283 = vmatprep.subr.mxu0 0.0
  %284 = vmatpush2.msra.mxu0 0.0
  %285 = vmatprep.subr.mxu0 0.0
  %286 = vmatpush2.msra.mxu0 0.0
  %287 = vmatprep.subr.mxu0 0.0
  %288 = vmatpush2.msra.mxu0 0.0
  %289 = vmatprep.subr.mxu0 0.0
  %290 = vmatpush2.msra.mxu0 0.0
  %291 = vmatprep.subr.mxu0 0.0
  %292 = vmatpush2.msra.mxu0 0.0
  %293 = vmatprep.subr.mxu0 0.0
  %294 = vmatpush2.msra.mxu0 0.0
  %295 = vmatprep.mubr.f32.mxu0 0.0
  %296 = vmatmul.mubr.f32.gmra.mxu0 %v226
  %v297 = vpop.f32.mrf.mxu0
  %v298 = vadd.f32 %v222, %v297
  %v299 = vpop.f32.mrf.mxu0
  %300 = vmatprep.mubr.f32.mxu0 0.0
  %301 = vmatmul.mubr.f32.gmra.mxu0 %v229
  %v302 = vpop.f32.mrf.mxu0
  %v303 = vadd.f32 %v222, %v302
  %v304 = vpop.f32.mrf.mxu0
  %305 = vdwg.mxu0
  %v306 = vmax.f32 %v298, 0.0
  %v307 = vmax.f32 %v303, 0.0
  %vm308 = vcmask 15360
  %309 = vst.msk [vmem:[%s7] sm:$0xff] %vm308, %v306
  %310 = vst.msk [vmem:[%s7 + $0x8] sm:$0xff] %vm308, %v307
  // Predicated region
  $region30: #{discriminator_forward.1} parent=0 // pred_check
    _
  $region31: #{discriminator_forward.1} parent=0 // pred_check_branch
    %312 = sbr.rel (0) target = $region33
  $region32: #{discriminator_forward.1} parent=0 // pred_region
    _
  $region33: #{discriminator_forward.1} parent=0 // pred_fallthru
    _
  // Predicated region
  $region34: #{discriminator_forward.1} parent=0 // pred_check
    _
  $region35: #{discriminator_forward.1} parent=0 // pred_check_branch
    %314 = sbr.rel (0) target = $region37
  $region36: #{discriminator_forward.1} parent=0 // pred_region
    _
  $region37: #{discriminator_forward.1} parent=0 // pred_fallthru
    _

</llo_original>
